<compile_context>
chip_gen: v7x
topology: tpu7x:2x2x1
jax: 0.10.0
libtpu: 0.0.40
codegen_flags: <defaults>
</compile_context>

<pallas_src>
import functools

import jax
import jax.numpy as jnp
from jax.experimental import pallas as pl
from jax.experimental.pallas import tpu as pltpu

_LANES = 128
_SUBLANES = 8
_TARGET_BLOCK_ELEMS = 256 * 1024  # ~1 MiB per f32 block per input stream


def _round_up(x, m):
    return ((x + m - 1) // m) * m


def _round_down(x, m):
    return (x // m) * m


def _view_2d_shape(shape):
    """Free (no-copy) 2-D view (rows, cols) of a contiguous array shape."""
    if len(shape) == 0:
        return 1, 1
    dims = list(shape)
    while len(dims) > 1 and dims[-1] == 1:   # (B, S, 1) -> (B, S)
        dims.pop()
    cols = dims[-1]
    rows = 1
    for d in dims[:-1]:
        rows *= d
    return rows, cols


def _pick_tiles(R, C):
    """Block shape (tr, tc): tc multiple of 128 (or full C), tr mult. of 8 (or full R)."""
    if C <= _LANES:
        tc = C
    else:
        tc = min(_round_up(C, _LANES),
                 max(_LANES, _round_down(_TARGET_BLOCK_ELEMS // _SUBLANES, _LANES)))
    max_rows = max(1, _TARGET_BLOCK_ELEMS // tc)
    if R <= max_rows:
        tr = R
    else:
        tr = max(_SUBLANES, _round_down(max_rows, _SUBLANES))
    return tr, tc


def _bce_logits(x, t):
    # Numerically stable BCE-with-logits (same formulation as torch):
    #   loss = max(x, 0) - x*t + log(1 + exp(-|x|))
    # (plain exp/log keep everything on the EUP slot)
    return jnp.maximum(x, 0.0) - x * t + jnp.log(1.0 + jnp.exp(-jnp.abs(x)))


def _bce_block_sum_kernel(x_ref, t_ref, o_ref, *, tr, tc, R, C):
    """reduce=True: per-block partial sum; tail mask only on edge blocks."""
    i = pl.program_id(0)
    j = pl.program_id(1)
    row_rem = R - i * tr   # valid rows in this block
    col_rem = C - j * tc   # valid cols in this block
    is_edge = jnp.logical_or(row_rem < tr, col_rem < tc)

    @pl.when(jnp.logical_not(is_edge))
    def _():
        loss = _bce_logits(x_ref[...].astype(jnp.float32),
                           t_ref[...].astype(jnp.float32))
        o_ref[...] = jnp.full((1, 1, _SUBLANES, _LANES), jnp.sum(loss),
                              dtype=jnp.float32)

    @pl.when(is_edge)
    def _():
        loss = _bce_logits(x_ref[...].astype(jnp.float32),
                           t_ref[...].astype(jnp.float32))
        ri = jax.lax.broadcasted_iota(jnp.int32, (tr, tc), 0)
        ci = jax.lax.broadcasted_iota(jnp.int32, (tr, tc), 1)
        loss = jnp.where((ri < row_rem) & (ci < col_rem), loss, 0.0)
        o_ref[...] = jnp.full((1, 1, _SUBLANES, _LANES), jnp.sum(loss),
                              dtype=jnp.float32)


def _bce_elementwise_kernel(x_ref, t_ref, o_ref):
    """reduce=False: plain elementwise BCE (OOB lanes of edge blocks are dropped)."""
    loss = _bce_logits(x_ref[...].astype(jnp.float32),
                       t_ref[...].astype(jnp.float32))
    o_ref[...] = loss.astype(o_ref.dtype)


def halting_loss(pred_halt_logits, true_halt_signal, reduce=True, ret_log=False):
    """Pallas equivalent of HaltingLoss()(pred, target, reduce=reduce)."""
    pred = jnp.asarray(pred_halt_logits)
    target = jnp.asarray(true_halt_signal)
    if target.dtype == jnp.bool_:
        target = target.astype(jnp.int8)
    if target.shape != pred.shape:
        target = jnp.broadcast_to(target, pred.shape)

    orig_shape = pred.shape
    out_dtype = (pred.dtype if jnp.issubdtype(pred.dtype, jnp.floating)
                 else jnp.float32)
    n = pred.size

    if n == 0:
        loss = jnp.float32(jnp.nan) if reduce else jnp.zeros(orig_shape, out_dtype)
        return (loss, {"halting_loss_bce": loss}) if ret_log else loss

    R, C = _view_2d_shape(orig_shape)
    x2 = pred.reshape(R, C)      # free metadata reshape, no copy
    t2 = target.reshape(R, C)
    tr, tc = _pick_tiles(R, C)
    GR = pl.cdiv(R, tr)
    GC = pl.cdiv(C, tc)
    grid = (GR, GC)
    params = pltpu.CompilerParams(
        dimension_semantics=("parallel", "parallel"))

    if reduce:
        kernel = functools.partial(_bce_block_sum_kernel, tr=tr, tc=tc, R=R, C=C)
        partials = pl.pallas_call(
            kernel,
            out_shape=jax.ShapeDtypeStruct((GR, GC, _SUBLANES, _LANES),
                                           jnp.float32),
            grid=grid,
            in_specs=[
                pl.BlockSpec((tr, tc), lambda i, j: (i, j)),
                pl.BlockSpec((tr, tc), lambda i, j: (i, j)),
            ],
            out_specs=pl.BlockSpec((1, 1, _SUBLANES, _LANES),
                                   lambda i, j: (i, j, 0, 0)),
            compiler_params=params,
        )(x2, t2)
        # Every lane of a block's partial tile holds the same block sum;
        # pick one per block and finish the tiny reduction + mean outside.
        loss = jnp.sum(partials[:, :, 0, 0]) / n
    else:
        loss2 = pl.pallas_call(
            _bce_elementwise_kernel,
            out_shape=jax.ShapeDtypeStruct((R, C), out_dtype),
            grid=grid,
            in_specs=[
                pl.BlockSpec((tr, tc), lambda i, j: (i, j)),
                pl.BlockSpec((tr, tc), lambda i, j: (i, j)),
            ],
            out_specs=pl.BlockSpec((tr, tc), lambda i, j: (i, j)),
            compiler_params=params,
        )(x2, t2)
        loss = loss2.reshape(orig_shape)

    if ret_log:
        # TODO(synk): key constant m_list.KEY_HALTING_LOSS_BCE replaced by a string.
        return loss, {"halting_loss_bce": jax.lax.stop_gradient(loss)}
    return loss


def _ref_bce_with_logits(x, t, reduce=True):
    x = jnp.asarray(x, jnp.float32)
    t = jnp.asarray(t, jnp.float32)
    loss = jnp.maximum(x, 0.0) - x * t + jnp.log1p(jnp.exp(-jnp.abs(x)))
    return jnp.mean(loss) if reduce else loss


if __name__ == "__main__":
    key = jax.random.PRNGKey(0)
    k1, k2, k3, k4 = jax.random.split(key, 4)

    # Small halting logits / binary halt signal over (batch=2, seq=8).
    pred_small = jax.random.normal(k1, (2, 8), dtype=jnp.float32) * 3.0
    true_small = (jax.random.uniform(k2, (2, 8)) > 0.5).astype(jnp.int32)

    out_mean = jax.block_until_ready(halting_loss(pred_small, true_small, True))
    ref_mean = _ref_bce_with_logits(pred_small, true_small, True)
    assert jnp.allclose(out_mean, ref_mean, atol=1e-5, rtol=1e-5), (out_mean, ref_mean)

    out_elem = jax.block_until_ready(halting_loss(pred_small, true_small, False))
    ref_elem = _ref_bce_with_logits(pred_small, true_small, False)
    assert out_elem.shape == pred_small.shape
    assert jnp.allclose(out_elem, ref_elem, atol=1e-5, rtol=1e-5)

    # Medium ragged size — exercises interior blocks + gated edge-block mask.
    pred_med = jax.random.normal(k3, (4, 40000), dtype=jnp.float32) * 2.0
    true_med = (jax.random.uniform(k4, (4, 40000)) > 0.5).astype(jnp.int32)

    out_mean_m = jax.block_until_ready(halting_loss(pred_med, true_med, True))
    ref_mean_m = _ref_bce_with_logits(pred_med, true_med, True)
    assert jnp.allclose(out_mean_m, ref_mean_m, atol=1e-5, rtol=1e-4), (
        out_mean_m, ref_mean_m)

    out_elem_m = jax.block_until_ready(halting_loss(pred_med, true_med, False))
    ref_elem_m = _ref_bce_with_logits(pred_med, true_med, False)
    assert out_elem_m.shape == pred_med.shape
    assert jnp.allclose(out_elem_m, ref_elem_m, atol=1e-5, rtol=1e-5)

    print("KERNEL_OK")
</pallas_src>

<mosaic_0001>
module attributes {stable_mosaic.version = 11 : i64} {
  func.func @_bce_block_sum_kernel(%arg0: i32, %arg1: i32, %arg2: memref<2x8xf32, #tpu.memory_space<vmem>>, %arg3: memref<2x8xi32, #tpu.memory_space<vmem>>, %arg4: memref<1x1x8x128xf32, #tpu.memory_space<vmem>>) attributes {dimension_semantics = [#tpu.dimension_semantics<parallel>, #tpu.dimension_semantics<parallel>], iteration_bounds = array<i64: 1, 1>, scalar_prefetch = 0 : i64, scratch_operands = 0 : i64, tpu.core_type = #tpu.core_type<tc>, window_params = [{transform_indices = @transform_0, window_bounds = array<i64: 2, 8>}, {transform_indices = @transform_1, window_bounds = array<i64: 2, 8>}, {transform_indices = @transform_2, window_bounds = array<i64: 1, 1, 8, 128>}]} {
    %c2_i32 = arith.constant 2 : i32
    %0 = arith.muli %arg0, %c2_i32 : i32
    %c2_i32_0 = arith.constant 2 : i32
    %1 = arith.subi %c2_i32_0, %0 : i32
    %c8_i32 = arith.constant 8 : i32
    %2 = arith.muli %arg1, %c8_i32 : i32
    %c8_i32_1 = arith.constant 8 : i32
    %3 = arith.subi %c8_i32_1, %2 : i32
    %c2_i32_2 = arith.constant 2 : i32
    %4 = arith.cmpi slt, %1, %c2_i32_2 : i32
    %c8_i32_3 = arith.constant 8 : i32
    %5 = arith.cmpi slt, %3, %c8_i32_3 : i32
    %6 = arith.ori %4, %5 : i1
    %true = arith.constant true
    %7 = arith.xori %6, %true : i1
    %8 = arith.extui %7 : i1 to i32
    %c0_i32 = arith.constant 0 : i32
    %9 = arith.cmpi ne, %8, %c0_i32 : i32
    scf.if %9 {
      %c0 = arith.constant 0 : index
      %c0_5 = arith.constant 0 : index
      %12 = vector.load %arg2[%c0, %c0_5] : memref<2x8xf32, #tpu.memory_space<vmem>>, vector<2x8xf32>
      %c0_6 = arith.constant 0 : index
      %c0_7 = arith.constant 0 : index
      %13 = vector.load %arg3[%c0_6, %c0_7] : memref<2x8xi32, #tpu.memory_space<vmem>>, vector<2x8xi32>
      %14 = arith.sitofp %13 : vector<2x8xi32> to vector<2x8xf32>
      %cst = arith.constant 0.000000e+00 : f32
      %15 = vector.broadcast %cst : f32 to vector<2x8xf32>
      %16 = arith.maximumf %12, %15 : vector<2x8xf32>
      %17 = arith.mulf %12, %14 : vector<2x8xf32>
      %18 = arith.subf %16, %17 : vector<2x8xf32>
      %19 = math.absf %12 : vector<2x8xf32>
      %cst_8 = arith.constant 0.000000e+00 : f32
      %20 = vector.broadcast %cst_8 : f32 to vector<2x8xf32>
      %21 = arith.subf %20, %19 : vector<2x8xf32>
      %22 = math.exp %21 : vector<2x8xf32>
      %cst_9 = arith.constant 1.000000e+00 : f32
      %23 = vector.broadcast %cst_9 : f32 to vector<2x8xf32>
      %24 = arith.addf %23, %22 : vector<2x8xf32>
      %25 = math.log %24 : vector<2x8xf32>
      %26 = arith.addf %18, %25 : vector<2x8xf32>
      %27 = vector.shape_cast %26 : vector<2x8xf32> to vector<1x2x8xf32>
      %cst_10 = arith.constant dense<0.000000e+00> : vector<1xf32>
      %28 = vector.multi_reduction <add>, %27, %cst_10 [1, 2] : vector<1x2x8xf32> to vector<1xf32>
      %29 = vector.shape_cast %28 : vector<1xf32> to vector<1x1x1xf32>
      %30 = vector.extract %29[0, 0, 0] : f32 from vector<1x1x1xf32>
      %31 = vector.broadcast %30 : f32 to vector<1x1x8x128xf32>
      %c0_11 = arith.constant 0 : index
      %c0_12 = arith.constant 0 : index
      %c0_13 = arith.constant 0 : index
      %c0_14 = arith.constant 0 : index
      %32 = vector.load %arg4[%c0_11, %c0_12, %c0_13, %c0_14] : memref<1x1x8x128xf32, #tpu.memory_space<vmem>>, vector<1x1x8x128xf32>
      tpu.vector_store %arg4[%c0_11, %c0_12, %c0_13, %c0_14], %31 {strides = array<i32>} : memref<1x1x8x128xf32, #tpu.memory_space<vmem>>, vector<1x1x8x128xf32>,
    } else {
    }
    %10 = arith.extui %6 : i1 to i32
    %c0_i32_4 = arith.constant 0 : i32
    %11 = arith.cmpi ne, %10, %c0_i32_4 : i32
    scf.if %11 {
      %c0 = arith.constant 0 : index
      %c0_5 = arith.constant 0 : index
      %12 = vector.load %arg2[%c0, %c0_5] : memref<2x8xf32, #tpu.memory_space<vmem>>, vector<2x8xf32>
      %c0_6 = arith.constant 0 : index
      %c0_7 = arith.constant 0 : index
      %13 = vector.load %arg3[%c0_6, %c0_7] : memref<2x8xi32, #tpu.memory_space<vmem>>, vector<2x8xi32>
      %14 = arith.sitofp %13 : vector<2x8xi32> to vector<2x8xf32>
      %cst = arith.constant 0.000000e+00 : f32
      %15 = vector.broadcast %cst : f32 to vector<2x8xf32>
      %16 = arith.maximumf %12, %15 : vector<2x8xf32>
      %17 = arith.mulf %12, %14 : vector<2x8xf32>
      %18 = arith.subf %16, %17 : vector<2x8xf32>
      %19 = math.absf %12 : vector<2x8xf32>
      %cst_8 = arith.constant 0.000000e+00 : f32
      %20 = vector.broadcast %cst_8 : f32 to vector<2x8xf32>
      %21 = arith.subf %20, %19 : vector<2x8xf32>
      %22 = math.exp %21 : vector<2x8xf32>
      %cst_9 = arith.constant 1.000000e+00 : f32
      %23 = vector.broadcast %cst_9 : f32 to vector<2x8xf32>
      %24 = arith.addf %23, %22 : vector<2x8xf32>
      %25 = math.log %24 : vector<2x8xf32>
      %26 = arith.addf %18, %25 : vector<2x8xf32>
      %27 = tpu.iota {dimensions = array<i32: 0>} : vector<2x8xi32>
      %28 = tpu.iota {dimensions = array<i32: 1>} : vector<2x8xi32>
      %29 = vector.broadcast %1 : i32 to vector<2x8xi32>
      %30 = arith.cmpi slt, %27, %29 : vector<2x8xi32>
      %31 = vector.broadcast %3 : i32 to vector<2x8xi32>
      %32 = arith.cmpi slt, %28, %31 : vector<2x8xi32>
      %33 = arith.andi %30, %32 : vector<2x8xi1>
      %cst_10 = arith.constant 0.000000e+00 : f32
      %34 = vector.broadcast %cst_10 : f32 to vector<2x8xf32>
      %35 = arith.select %33, %26, %34 : vector<2x8xi1>, vector<2x8xf32>
      %36 = vector.shape_cast %35 : vector<2x8xf32> to vector<1x2x8xf32>
      %cst_11 = arith.constant dense<0.000000e+00> : vector<1xf32>
      %37 = vector.multi_reduction <add>, %36, %cst_11 [1, 2] : vector<1x2x8xf32> to vector<1xf32>
      %38 = vector.shape_cast %37 : vector<1xf32> to vector<1x1x1xf32>
      %39 = vector.extract %38[0, 0, 0] : f32 from vector<1x1x1xf32>
      %40 = vector.broadcast %39 : f32 to vector<1x1x8x128xf32>
      %c0_12 = arith.constant 0 : index
      %c0_13 = arith.constant 0 : index
      %c0_14 = arith.constant 0 : index
      %c0_15 = arith.constant 0 : index
      %41 = vector.load %arg4[%c0_12, %c0_13, %c0_14, %c0_15] : memref<1x1x8x128xf32, #tpu.memory_space<vmem>>, vector<1x1x8x128xf32>
      tpu.vector_store %arg4[%c0_12, %c0_13, %c0_14, %c0_15], %40 {strides = array<i32>} : memref<1x1x8x128xf32, #tpu.memory_space<vmem>>, vector<1x1x8x128xf32>,
    } else {
    }
    return
  }
  func.func @transform_0(%arg0: i32, %arg1: i32) -> (i32, i32) {
    %c0_i32 = arith.constant 0 : i32
    return %arg0, %arg1 : i32, i32
  }
  func.func @transform_1(%arg0: i32, %arg1: i32) -> (i32, i32) {
    %c0_i32 = arith.constant 0 : i32
    return %arg0, %arg1 : i32, i32
  }
  func.func @transform_2(%arg0: i32, %arg1: i32) -> (i32, i32, i32, i32) {
    %c0_i32 = arith.constant 0 : i32
    %c0_i32_0 = arith.constant 0 : i32
    %c0_i32_1 = arith.constant 0 : i32
    return %arg0, %arg1, %c0_i32, %c0_i32_0 : i32, i32, i32, i32
  }
}

</mosaic_0001>

<llo_original>
// kernel: tpu_custom_call.1
$region0: #{tpu_custom_call.1}
  #allocation0 [shape = 'u32[]', space=smem, size = 0x4, offset = 0x4, fixed_abs, tag = 'smem constant byte address 0x4 - core index']
  #allocation1 [shape = 'u32[144,128]{1,0:T(1,128)}', space=vmem, size = 0x12000, scoped, tag = 'internal scratch']
  %s0 = inlined_call_operand.hbm [shape: f32[2,8], index: 0, kind: input, shape index: {}]
  %s1 = inlined_call_operand.vmem [shape: s32[2,8], index: 1, kind: input, shape index: {}]
  %s2 = inlined_call_operand.hbm [shape: f32[1,1,8,128], index: 2, kind: output, shape index: {}]
  %s3 = sld [smem:[#allocation0]]
  $region30: #{tpu_custom_call.1} parent=0
    _
  %s5 = ssub.s32 1, %s3
  %s6 = scalar_select 0, %s5, %s3
  $region1: #{tpu_custom_call.1} parent=0
    #allocation2 [shape = 'u8[1024]{0}', space=vmem, size = 0x400, scoped, tag = 'input window, operand 0, single buffered']
    #allocation3 [shape = 's32[1]{0}', space=sflag, size = 0x4, scoped, tag = 'scoped memory for tpu_custom_call.1']
    #allocation4 [shape = 's32[1]{0}', space=sflag, size = 0x4, scoped, tag = 'scoped memory for tpu_custom_call.1']
    #allocation5 [shape = 'u8[4096]{0}', space=vmem, size = 0x1000, scoped, tag = 'output window, operand 0, single buffered']
    %7 = vsyncpa [#allocation3], 0
    %8 = vsyncpa [#allocation4], 0
    // Predicated region
    $region2: #{tpu_custom_call.1} parent=1 // pred_check
      _
    $region3: #{tpu_custom_call.1} parent=1 // pred_check_branch
      %10 = sbr.rel (0) target = $region5
    $region4: #{tpu_custom_call.1} parent=1 // pred_region
      %s12 = ssub.s32 32, 32
      %13 = vsyncadd [#allocation3], %s12
      %s15 = sshll.u32 [#allocation2], 4
      %s16 = int_to_ptr.vmem [resolvable:$true] %s15
      %18 = dma.hbm_to_vmem [thread:$0]  %s0, 32, %s16, [#allocation3]
    $region5: #{tpu_custom_call.1} parent=1 // pred_fallthru
      _
    // Predicated region
    $region6: #{tpu_custom_call.1} parent=1 // pred_check
      _
    $region7: #{tpu_custom_call.1} parent=1 // pred_check_branch
      %20 = sbr.rel (0) target = $region9
    $region8: #{tpu_custom_call.1} parent=1 // pred_region
      _
    $region9: #{tpu_custom_call.1} parent=1 // pred_fallthru
      _
    // Predicated region
    $region10: #{tpu_custom_call.1} parent=1 // pred_check
      _
    $region11: #{tpu_custom_call.1} parent=1 // pred_check_branch
      %22 = sbr.rel (0) target = $region13
    $region12: #{tpu_custom_call.1} parent=1 // pred_region
      %23 = dma.done [#allocation3], 32
    $region13: #{tpu_custom_call.1} parent=1 // pred_fallthru
      _
    %s24 = smul.u32 0, 2
    %s25 = ssub.s32 2, %s24
    %s26 = smul.u32 0, 8
    %s27 = ssub.s32 8, %s26
    %p28 = scmp.lt.s32.totalorder %s25, 2
    %p29 = scmp.lt.s32.totalorder %s27, 8
    %p30 = por %p28, %p29
    // Predicated region
    $region14: #{tpu_custom_call.1} parent=1 // pred_check
      %p31 = pneg %p30
    $region15: #{tpu_custom_call.1} parent=1 // pred_check_branch
      %33 = sbr.rel (%p31) target = $region17
    $region16: #{tpu_custom_call.1} parent=1 // pred_region
      %v34 = vld [vmem:[#allocation2] sm:$0x3]
      %v35 = vld [vmem:[%s1] sm:$0x3]
      %v36 = vcvt.s32.f32 %v35
      %v37 = vmax.f32 %v34, 0.0
      %v38 = vmul.f32 %v34, %v36
      %v39 = vsub.f32 %v37, %v38
      %v40 = vand.u32 2147483647, %v34
      %v41 = vsub.f32 0.0, %v40
      %v42 = vmul.f32 %v41, 1.442695
      %v43 = vpow.pop %v42
      %v44 = vadd.f32 %v43, 1.0
      %v45 = vlog2.pop %v44
      %v46 = vmul.f32 %v45, 0.6931472
      %v47 = vadd.f32 %v39, %v46
      %v48 = vlaneseq
      %v49 = vshrl.u32 %v48, 7
      %v50 = vlaneseq
      %v51 = vand.u32 %v50, 127
      %v52 = vstv %s25
      %vm53 = vcmp.lt.s32.totalorder %v49, %v52
      %v54 = vstv %s27
      %vm55 = vcmp.lt.s32.totalorder %v51, %v54
      %vm56 = vmand %vm53, %vm55
      %v57 = vsel %vm56, %v47, 0.0
      %vm58 = vcmask 58368
      %v59 = vsel %vm58, %v57, 0.0
      %60 = vadd.xlane.f32.xlu0 %v59
      %v61 = vpop.xlane.xlu0 %60
      %v62 = vrot.slane %v61, 4
      %v63 = vadd.f32 %v61, %v62
      %v64 = vrot.slane %v63, 2
      %v65 = vadd.f32 %v63, %v64
      %v66 = vrot.slane %v65, 1
      %v67 = vadd.f32 %v65, %v66
      %s68 = vtos %v67
      %v69 = vstv %s68
      %70 = vst [vmem:[#allocation5] sm:$0xff] %v69
    $region17: #{tpu_custom_call.1} parent=1 // pred_fallthru
      _
    %p71 = pneg %p30
    // Predicated region
    $region18: #{tpu_custom_call.1} parent=1 // pred_check
      _
    $region19: #{tpu_custom_call.1} parent=1 // pred_check_branch
      %73 = sbr.rel (%p30) target = $region21
    $region20: #{tpu_custom_call.1} parent=1 // pred_region
      %v74 = vld [vmem:[#allocation2] sm:$0x3]
      %v75 = vld [vmem:[%s1] sm:$0x3]
      %v76 = vcvt.s32.f32 %v75
      %v77 = vmax.f32 %v74, 0.0
      %v78 = vmul.f32 %v74, %v76
      %v79 = vsub.f32 %v77, %v78
      %v80 = vand.u32 2147483647, %v74
      %v81 = vsub.f32 0.0, %v80
      %v82 = vmul.f32 %v81, 1.442695
      %v83 = vpow.pop %v82
      %v84 = vadd.f32 %v83, 1.0
      %v85 = vlog2.pop %v84
      %v86 = vmul.f32 %v85, 0.6931472
      %v87 = vadd.f32 %v79, %v86
      %vm88 = vcmask 58368
      %v89 = vsel %vm88, %v87, 0.0
      %90 = vadd.xlane.f32.xlu0 %v89
      %v91 = vpop.xlane.xlu0 %90
      %v92 = vrot.slane %v91, 4
      %v93 = vadd.f32 %v91, %v92
      %v94 = vrot.slane %v93, 2
      %v95 = vadd.f32 %v93, %v94
      %v96 = vrot.slane %v95, 1
      %v97 = vadd.f32 %v95, %v96
      %s98 = vtos %v97
      %v99 = vstv %s98
      %100 = vst [vmem:[#allocation5] sm:$0xff] %v99
    $region21: #{tpu_custom_call.1} parent=1 // pred_fallthru
      _
    // Predicated region
    $region22: #{tpu_custom_call.1} parent=1 // pred_check
      _
    $region23: #{tpu_custom_call.1} parent=1 // pred_check_branch
      %102 = sbr.rel (0) target = $region25
    $region24: #{tpu_custom_call.1} parent=1 // pred_region
      %s104 = ssub.s32 128, 128
      %105 = vsyncadd [#allocation4], %s104
      %s107 = sshll.u32 [#allocation5], 4
      %s108 = int_to_ptr.vmem [resolvable:$true] %s107
      %110 = dma.vmem_to_hbm [thread:$0]  %s108, 128, %s2, [#allocation4]
    $region25: #{tpu_custom_call.1} parent=1 // pred_fallthru
      _
    // Predicated region
    $region26: #{tpu_custom_call.1} parent=1 // pred_check
      _
    $region27: #{tpu_custom_call.1} parent=1 // pred_check_branch
      %112 = sbr.rel (0) target = $region29
    $region28: #{tpu_custom_call.1} parent=1 // pred_region
      %113 = dma.done [#allocation4], 128
    $region29: #{tpu_custom_call.1} parent=1 // pred_fallthru
      _
    %114 = vsyncpa [#allocation3], 1
    %115 = vsyncpa [#allocation4], 1

</llo_original>
